<compile_context>
chip_gen: v7x
topology: tpu7x:2x2x1
jax: 0.10.0
libtpu: 0.0.40
codegen_flags: <defaults>
</compile_context>

<pallas_src>
import functools

import jax
import jax.numpy as jnp
from jax import lax
from jax.experimental import pallas as pl
from jax.experimental.pallas import tpu as pltpu


def _cdiv(a, b):
    return -(-a // b)


def _round_up(x, m):
    return _cdiv(x, m) * m


def _vmem_capacity_bytes():
    """Physical VMEM per core; conservative fallback if the query fails."""
    try:
        cap = int(pltpu.get_tpu_info().vmem_capacity_bytes)
        if cap > 0:
            return cap
    except Exception:
        pass
    return 64 * 1024 * 1024  # v7x worst case


def _vmem_footprint(bb, bk, H, N_p, x_bytes, w_bytes, x_bufs, w1_bufs):
    """Approximate VMEM bytes for one grid step's working set."""
    f = x_bufs * bb * bk * x_bytes          # x tile
    f += w1_bufs * bk * H * w_bytes         # W1 slice (1 buffer when resident)
    f += H * N_p * w_bytes                  # W2, resident, single-buffered
    f += 4 * 8 * max(H, N_p) * 4            # (1, dim) param rows (sublane-padded)
    f += 2 * bb * N_p * x_bytes             # out tile, double-buffered
    f += bb * H * 4                         # f32 accumulator scratch
    return f


def _choose_tiles(B, K, H, N_p, x_bytes, w_bytes, budget):
    """Pick (block_batch, block_k, nk, x_bufs, w1_bufs) from the VMEM budget."""
    # Sublane packing: f32 -> 8 rows, bf16 -> 16, int8/fp8 -> 32.
    row_align = 8 * max(1, 4 // x_bytes)

    # Keep >= 2 batch tiles when the batch allows it so the "parallel" axis
    # shards across both v7x TensorCores and x/out DMA overlaps compute.
    if B > row_align:
        bb_cap = min(512, _round_up(_cdiv(B, 2), row_align))
    else:
        bb_cap = row_align

    bb_cands = []
    for v in (512, 384, 256, 192, 128, 96, 64, 48, 32, 16, 8):
        v = _round_up(v, row_align)
        if v <= bb_cap and v not in bb_cands:
            bb_cands.append(v)
    if not bb_cands:
        bb_cands = [bb_cap]
    bb_cands.sort(reverse=True)

    # 1) W1 fully resident (nk == 1): W1 is read from HBM exactly once.
    for bb in bb_cands:
        if _vmem_footprint(bb, K, H, N_p, x_bytes, w_bytes, 2, 1) <= budget:
            return bb, K, 1, 2, 1

    # 2) Stream W1 along K.  Prefer the largest batch tile (fewer W1 re-reads),
    #    then the largest K slice, then a 3-deep pipeline if it still fits.
    for bb in bb_cands:
        for bk in (512, 256, 128):
            if bk >= K:
                continue
            nk = _cdiv(K, bk)
            for bufs in (3, 2):
                if _vmem_footprint(bb, bk, H, N_p, x_bytes, w_bytes,
                                   bufs, bufs) <= budget:
                    return bb, bk, nk, bufs, bufs

    # 3) Last resort: smallest tiles (may spill, but lowers).
    bb = bb_cands[-1]
    if K > 128:
        return bb, 128, _cdiv(K, 128), 2, 2
    return bb, K, 1, 2, 1


def _expert_kernel(x_ref, w1_ref, b1_ref, g_ref, beta_ref, w2_ref, b2_ref,
                   o_ref, acc_ref):
    """Fused (x @ W1 + b1) -> GELU(erf) -> LayerNorm -> (@ W2 + b2).

    Grid = (batch_tiles, k_tiles); K is the last ("arbitrary") axis.
    acc_ref is a [block_batch, hidden] f32 accumulator in VMEM scratch.
    """
    k = pl.program_id(1)
    nk = pl.num_programs(1)

    @pl.when(k == 0)
    def _():
        acc_ref[...] = jnp.zeros_like(acc_ref)

    # ---- Linear 1, K-streamed (MXU, native-dtype inputs, f32 accumulate) ----
    acc_ref[...] += jnp.dot(x_ref[...], w1_ref[...],
                            preferred_element_type=jnp.float32)

    @pl.when(k == nk - 1)
    def _():
        # Grid-invariant row params, read once, in f32 (elementwise stays f32:
        # correct on v5e which has no bf16 VPU/EUP, cheap everywhere).
        b1 = b1_ref[...].astype(jnp.float32)
        gamma = g_ref[...].astype(jnp.float32)
        beta = beta_ref[...].astype(jnp.float32)
        b2 = b2_ref[...].astype(jnp.float32)

        h = acc_ref[...] + b1

        # ---- GELU (exact erf form, matches torch.nn.GELU default) ----
        h = 0.5 * h * (1.0 + lax.erf(h * jnp.float32(0.7071067811865476)))

        # ---- LayerNorm over hidden dim (eps = 1e-5, affine) ----
        mean = jnp.mean(h, axis=-1, keepdims=True)
        centered = h - mean
        var = jnp.mean(centered * centered, axis=-1, keepdims=True)
        hn = centered * lax.rsqrt(var + jnp.float32(1e-5))
        hn = hn * gamma + beta

        # ---- Linear 2 (MXU): cast activations to the weight dtype so bf16
        # weights take the native bf16 x bf16 -> f32 MXU path. ----
        out = jnp.dot(hn.astype(w2_ref.dtype), w2_ref[...],
                      preferred_element_type=jnp.float32) + b2

        o_ref[...] = out.astype(o_ref.dtype)


def _build_expert_call(*, B_p, H, N_p, nb, nk, bb, bk, x_dtype, x_bufs,
                       w1_bufs, vmem_limit, cost, allow_buffered):
    def spec(shape, index_map, buffers=None):
        if buffers is None or buffers == 2 or not allow_buffered:
            return pl.BlockSpec(shape, index_map)
        try:
            return pl.BlockSpec(shape, index_map,
                                pipeline_mode=pl.Buffered(int(buffers)))
        except TypeError:  # older jax without pipeline_mode on BlockSpec
            return pl.BlockSpec(shape, index_map)

    if nk == 1:
        w1_spec = spec((bk, H), lambda i, k: (0, 0), buffers=1)   # resident
    else:
        w1_spec = spec((bk, H), lambda i, k: (k, 0), buffers=w1_bufs)

    in_specs = [
        spec((bb, bk), lambda i, k: (i, k), buffers=x_bufs),       # x
        w1_spec,                                                   # W1
        spec((1, H), lambda i, k: (0, 0), buffers=1),              # b1
        spec((1, H), lambda i, k: (0, 0), buffers=1),              # gamma
        spec((1, H), lambda i, k: (0, 0), buffers=1),              # beta
        spec((H, N_p), lambda i, k: (0, 0), buffers=1),            # W2 (resident)
        spec((1, N_p), lambda i, k: (0, 0), buffers=1),            # b2
    ]

    return pl.pallas_call(
        _expert_kernel,
        out_shape=jax.ShapeDtypeStruct((B_p, N_p), x_dtype),
        grid_spec=pltpu.PrefetchScalarGridSpec(
            num_scalar_prefetch=0,
            grid=(nb, nk),
            in_specs=in_specs,
            out_specs=pl.BlockSpec((bb, N_p), lambda i, k: (i, 0)),
            scratch_shapes=[pltpu.VMEM((bb, H), jnp.float32)],
        ),
        compiler_params=pltpu.CompilerParams(
            dimension_semantics=("parallel", "arbitrary"),
            vmem_limit_bytes=int(vmem_limit),
        ),
        cost_estimate=cost,
    )


def expert_forward(x, params):
    """Expert forward pass with a fused Pallas kernel.

    x      : [B, in_features]
    params : dict with w1 [in, hid], b1 [hid], gamma [hid], beta [hid],
             w2 [hid, num_classes], b2 [num_classes]
    """
    B, in_features = x.shape
    hidden = params["w1"].shape[1]
    num_classes = params["w2"].shape[1]

    x_bytes = jnp.dtype(x.dtype).itemsize
    w_bytes = jnp.dtype(params["w1"].dtype).itemsize

    # Lane-dense output; fill the 256-wide MXU on v6e/v7x when classes > 128.
    N_p = _round_up(num_classes, 256 if num_classes > 128 else 128)

    cap = _vmem_capacity_bytes()
    budget = (cap * 3) // 4          # working-set target (~96 MiB v6e, ~48 MiB v7x)
    vmem_limit = (cap * 7) // 8      # Mosaic scoped-VMEM ceiling

    bb, bk, nk, x_bufs, w1_bufs = _choose_tiles(
        B, in_features, hidden, N_p, x_bytes, w_bytes, budget)

    B_p = _round_up(B, bb)
    K_p = bk * nk
    nb = B_p // bb

    # ---------------- zero-padding (exactness preserved) ----------------
    xp = x
    if (B_p, K_p) != (B, in_features):
        xp = jnp.pad(x, ((0, B_p - B), (0, K_p - in_features)))
    w1 = params["w1"]
    if K_p != in_features:
        w1 = jnp.pad(w1, ((0, K_p - in_features), (0, 0)))
    w2 = params["w2"]
    b2 = params["b2"]
    if N_p != num_classes:
        w2 = jnp.pad(w2, ((0, 0), (0, N_p - num_classes)))
        b2 = jnp.pad(b2, ((0, N_p - num_classes),))

    b1 = params["b1"].reshape(1, hidden)
    gamma = params["gamma"].reshape(1, hidden)
    beta = params["beta"].reshape(1, hidden)
    b2 = b2.reshape(1, N_p)

    # W1 is read once when resident, once per batch tile when K-streamed.
    w1_reads = 1 if nk == 1 else nb
    cost = pl.CostEstimate(
        flops=2 * B_p * (K_p * hidden + hidden * N_p),
        transcendentals=B_p * hidden,
        bytes_accessed=int(B_p * K_p * x_bytes
                           + w1_reads * K_p * hidden * w_bytes
                           + hidden * N_p * w_bytes
                           + B_p * N_p * x_bytes),
    )

    build = functools.partial(
        _build_expert_call, B_p=B_p, H=hidden, N_p=N_p, nb=nb, nk=nk, bb=bb,
        bk=bk, x_dtype=x.dtype, x_bufs=x_bufs, w1_bufs=w1_bufs,
        vmem_limit=vmem_limit, cost=cost)
    args = (xp, w1, b1, gamma, beta, w2, b2)
    try:
        out = build(allow_buffered=True)(*args)
    except Exception:
        # Fall back to default double-buffered pipelining if this jax/Mosaic
        # build rejects pipeline_mode / Buffered.
        out = build(allow_buffered=False)(*args)
    return out[:B, :num_classes]


def init_expert_params(key, in_features, hidden_dim, num_classes, dtype=jnp.float32):
    """Deterministic synthetic init (uniform like PyTorch's default Linear init)."""
    k1, k2, k3, k4 = jax.random.split(key, 4)
    lim1 = 1.0 / jnp.sqrt(in_features)
    lim2 = 1.0 / jnp.sqrt(hidden_dim)
    return {
        "w1": jax.random.uniform(k1, (in_features, hidden_dim), dtype, -lim1, lim1),
        "b1": jax.random.uniform(k2, (hidden_dim,), dtype, -lim1, lim1),
        "gamma": jnp.ones((hidden_dim,), dtype),
        "beta": jnp.zeros((hidden_dim,), dtype),
        "w2": jax.random.uniform(k3, (hidden_dim, num_classes), dtype, -lim2, lim2),
        "b2": jax.random.uniform(k4, (num_classes,), dtype, -lim2, lim2),
    }


def expert_reference(x, params):
    """Pure-JAX reference of the PyTorch forward (sanity check)."""
    h = x @ params["w1"] + params["b1"]
    h = jax.nn.gelu(h, approximate=False)
    mean = jnp.mean(h, axis=-1, keepdims=True)
    var = jnp.mean((h - mean) ** 2, axis=-1, keepdims=True)
    hn = (h - mean) / jnp.sqrt(var + 1e-5)
    hn = hn * params["gamma"] + params["beta"]
    return hn @ params["w2"] + params["b2"]


if __name__ == "__main__":
    key = jax.random.PRNGKey(0)
    k_x, k_p = jax.random.split(key)

    batch = 8
    in_features = 32
    hidden_dim = 64
    num_classes = 16     # exercises the lane-dense (pad-to-128) output path

    params = init_expert_params(k_p, in_features, hidden_dim, num_classes)
    x = jax.random.normal(k_x, (batch, in_features), jnp.float32)

    # f32 path
    out = jax.block_until_ready(expert_forward(x, params))
    ref = expert_reference(x, params)
    assert out.shape == (batch, num_classes)
    assert jnp.allclose(out, ref, atol=1e-4, rtol=1e-4), "f32 mismatch vs reference"

    # bf16 path (native-dtype MXU inputs), looser tolerance
    params_bf = {k: v.astype(jnp.bfloat16) for k, v in params.items()}
    x_bf = x.astype(jnp.bfloat16)
    out_bf = jax.block_until_ready(expert_forward(x_bf, params_bf))
    ref_bf = expert_reference(
        x_bf.astype(jnp.float32),
        {k: v.astype(jnp.float32) for k, v in params_bf.items()})
    assert out_bf.shape == (batch, num_classes)
    assert out_bf.dtype == jnp.bfloat16
    assert jnp.allclose(out_bf.astype(jnp.float32), ref_bf, atol=5e-2, rtol=5e-2), \
        "bf16 mismatch vs reference"

    print("KERNEL_OK")
</pallas_src>

<mosaic_0001>
module attributes {stable_mosaic.version = 11 : i64} {
  func.func @_expert_kernel(%arg0: i32, %arg1: i32, %arg2: memref<8x32xf32, #tpu.memory_space<vmem>>, %arg3: memref<32x64xf32, #tpu.memory_space<vmem>>, %arg4: memref<1x64xf32, #tpu.memory_space<vmem>>, %arg5: memref<1x64xf32, #tpu.memory_space<vmem>>, %arg6: memref<1x64xf32, #tpu.memory_space<vmem>>, %arg7: memref<64x128xf32, #tpu.memory_space<vmem>>, %arg8: memref<1x128xf32, #tpu.memory_space<vmem>>, %arg9: memref<8x128xf32, #tpu.memory_space<vmem>>, %arg10: memref<8x64xf32, #tpu.memory_space<vmem>>) attributes {dimension_semantics = [#tpu.dimension_semantics<parallel>, #tpu.dimension_semantics<arbitrary>], iteration_bounds = array<i64: 1, 1>, scalar_prefetch = 0 : i64, scratch_operands = 1 : i64, tpu.core_type = #tpu.core_type<tc>, window_params = [{transform_indices = @transform_0, window_bounds = array<i64: 8, 32>}, {pipeline_mode = #tpu.pipeline_mode<synchronous>, transform_indices = @transform_1, window_bounds = array<i64: 32, 64>}, {pipeline_mode = #tpu.pipeline_mode<synchronous>, transform_indices = @transform_2, window_bounds = array<i64: 1, 64>}, {pipeline_mode = #tpu.pipeline_mode<synchronous>, transform_indices = @transform_3, window_bounds = array<i64: 1, 64>}, {pipeline_mode = #tpu.pipeline_mode<synchronous>, transform_indices = @transform_4, window_bounds = array<i64: 1, 64>}, {pipeline_mode = #tpu.pipeline_mode<synchronous>, transform_indices = @transform_5, window_bounds = array<i64: 64, 128>}, {pipeline_mode = #tpu.pipeline_mode<synchronous>, transform_indices = @transform_6, window_bounds = array<i64: 1, 128>}, {transform_indices = @transform_7, window_bounds = array<i64: 8, 128>}]} {
    %c0_i32 = arith.constant 0 : i32
    %0 = arith.cmpi eq, %arg1, %c0_i32 : i32
    %1 = arith.extui %0 : i1 to i32
    %c0_i32_0 = arith.constant 0 : i32
    %2 = arith.cmpi ne, %1, %c0_i32_0 : i32
    scf.if %2 {
      %cst_10 = arith.constant 0.000000e+00 : f32
      %12 = vector.broadcast %cst_10 : f32 to vector<8x64xf32>
      %c0_11 = arith.constant 0 : index
      %c0_12 = arith.constant 0 : index
      %13 = vector.load %arg10[%c0_11, %c0_12] : memref<8x64xf32, #tpu.memory_space<vmem>>, vector<8x64xf32>
      tpu.vector_store %arg10[%c0_11, %c0_12], %12 {strides = array<i32>} : memref<8x64xf32, #tpu.memory_space<vmem>>, vector<8x64xf32>,
    } else {
    }
    %c0 = arith.constant 0 : index
    %c0_1 = arith.constant 0 : index
    %3 = vector.load %arg10[%c0, %c0_1] : memref<8x64xf32, #tpu.memory_space<vmem>>, vector<8x64xf32>
    %c0_2 = arith.constant 0 : index
    %c0_3 = arith.constant 0 : index
    %4 = vector.load %arg2[%c0_2, %c0_3] : memref<8x32xf32, #tpu.memory_space<vmem>>, vector<8x32xf32>
    %c0_4 = arith.constant 0 : index
    %c0_5 = arith.constant 0 : index
    %5 = vector.load %arg3[%c0_4, %c0_5] : memref<32x64xf32, #tpu.memory_space<vmem>>, vector<32x64xf32>
    %cst = arith.constant dense<0.000000e+00> : vector<8x64xf32>
    %6 = tpu.matmul %4, %5, %cst {dimension_numbers = #tpu.dot_dimension_numbers<[1], [0], [0], [1], [0, 0, 1, 1], [], []>} : vector<8x32xf32>, vector<32x64xf32>, vector<8x64xf32> -> vector<8x64xf32>
    %7 = arith.addf %3, %6 : vector<8x64xf32>
    %c0_6 = arith.constant 0 : index
    %c0_7 = arith.constant 0 : index
    %8 = vector.load %arg10[%c0_6, %c0_7] : memref<8x64xf32, #tpu.memory_space<vmem>>, vector<8x64xf32>
    tpu.vector_store %arg10[%c0_6, %c0_7], %7 {strides = array<i32>} : memref<8x64xf32, #tpu.memory_space<vmem>>, vector<8x64xf32>,
    %c0_i32_8 = arith.constant 0 : i32
    %9 = arith.cmpi eq, %arg1, %c0_i32_8 : i32
    %10 = arith.extui %9 : i1 to i32
    %c0_i32_9 = arith.constant 0 : i32
    %11 = arith.cmpi ne, %10, %c0_i32_9 : i32
    scf.if %11 {
      %c0_10 = arith.constant 0 : index
      %c0_11 = arith.constant 0 : index
      %12 = vector.load %arg4[%c0_10, %c0_11] : memref<1x64xf32, #tpu.memory_space<vmem>>, vector<1x64xf32>
      %c0_12 = arith.constant 0 : index
      %c0_13 = arith.constant 0 : index
      %13 = vector.load %arg5[%c0_12, %c0_13] : memref<1x64xf32, #tpu.memory_space<vmem>>, vector<1x64xf32>
      %c0_14 = arith.constant 0 : index
      %c0_15 = arith.constant 0 : index
      %14 = vector.load %arg6[%c0_14, %c0_15] : memref<1x64xf32, #tpu.memory_space<vmem>>, vector<1x64xf32>
      %c0_16 = arith.constant 0 : index
      %c0_17 = arith.constant 0 : index
      %15 = vector.load %arg8[%c0_16, %c0_17] : memref<1x128xf32, #tpu.memory_space<vmem>>, vector<1x128xf32>
      %c0_18 = arith.constant 0 : index
      %c0_19 = arith.constant 0 : index
      %16 = vector.load %arg10[%c0_18, %c0_19] : memref<8x64xf32, #tpu.memory_space<vmem>>, vector<8x64xf32>
      %17 = vector.broadcast %12 : vector<1x64xf32> to vector<8x64xf32>
      %18 = arith.addf %16, %17 : vector<8x64xf32>
      %cst_20 = arith.constant 5.000000e-01 : f32
      %19 = vector.broadcast %cst_20 : f32 to vector<8x64xf32>
      %20 = arith.mulf %19, %18 : vector<8x64xf32>
      %cst_21 = arith.constant 0.707106769 : f32
      %21 = vector.broadcast %cst_21 : f32 to vector<8x64xf32>
      %22 = arith.mulf %18, %21 : vector<8x64xf32>
      %23 = math.erf %22 : vector<8x64xf32>
      %cst_22 = arith.constant 1.000000e+00 : f32
      %24 = vector.broadcast %cst_22 : f32 to vector<8x64xf32>
      %25 = arith.addf %24, %23 : vector<8x64xf32>
      %26 = arith.mulf %20, %25 : vector<8x64xf32>
      %cst_23 = arith.constant dense<0.000000e+00> : vector<8xf32>
      %27 = vector.multi_reduction <add>, %26, %cst_23 [1] : vector<8x64xf32> to vector<8xf32>
      %28 = vector.shape_cast %27 : vector<8xf32> to vector<8x1xf32>
      %cst_24 = arith.constant 6.400000e+01 : f32
      %29 = vector.broadcast %cst_24 : f32 to vector<8x1xf32>
      %30 = arith.divf %28, %29 : vector<8x1xf32>
      %31 = vector.broadcast %30 : vector<8x1xf32> to vector<8x64xf32>
      %32 = arith.subf %26, %31 : vector<8x64xf32>
      %33 = arith.mulf %32, %32 : vector<8x64xf32>
      %cst_25 = arith.constant dense<0.000000e+00> : vector<8xf32>
      %34 = vector.multi_reduction <add>, %33, %cst_25 [1] : vector<8x64xf32> to vector<8xf32>
      %35 = vector.shape_cast %34 : vector<8xf32> to vector<8x1xf32>
      %cst_26 = arith.constant 6.400000e+01 : f32
      %36 = vector.broadcast %cst_26 : f32 to vector<8x1xf32>
      %37 = arith.divf %35, %36 : vector<8x1xf32>
      %cst_27 = arith.constant 9.99999974E-6 : f32
      %38 = vector.broadcast %cst_27 : f32 to vector<8x1xf32>
      %39 = arith.addf %37, %38 : vector<8x1xf32>
      %40 = math.rsqrt %39 : vector<8x1xf32>
      %41 = vector.broadcast %40 : vector<8x1xf32> to vector<8x64xf32>
      %42 = arith.mulf %32, %41 : vector<8x64xf32>
      %43 = vector.broadcast %13 : vector<1x64xf32> to vector<8x64xf32>
      %44 = arith.mulf %42, %43 : vector<8x64xf32>
      %45 = vector.broadcast %14 : vector<1x64xf32> to vector<8x64xf32>
      %46 = arith.addf %44, %45 : vector<8x64xf32>
      %c0_28 = arith.constant 0 : index
      %c0_29 = arith.constant 0 : index
      %47 = vector.load %arg7[%c0_28, %c0_29] : memref<64x128xf32, #tpu.memory_space<vmem>>, vector<64x128xf32>
      %cst_30 = arith.constant dense<0.000000e+00> : vector<8x128xf32>
      %48 = tpu.matmul %46, %47, %cst_30 {dimension_numbers = #tpu.dot_dimension_numbers<[1], [0], [0], [1], [0, 0, 1, 1], [], []>} : vector<8x64xf32>, vector<64x128xf32>, vector<8x128xf32> -> vector<8x128xf32>
      %49 = vector.broadcast %15 : vector<1x128xf32> to vector<8x128xf32>
      %50 = arith.addf %48, %49 : vector<8x128xf32>
      %c0_31 = arith.constant 0 : index
      %c0_32 = arith.constant 0 : index
      %51 = vector.load %arg9[%c0_31, %c0_32] : memref<8x128xf32, #tpu.memory_space<vmem>>, vector<8x128xf32>
      tpu.vector_store %arg9[%c0_31, %c0_32], %50 {strides = array<i32>} : memref<8x128xf32, #tpu.memory_space<vmem>>, vector<8x128xf32>,
    } else {
    }
    return
  }
  func.func @transform_0(%arg0: i32, %arg1: i32) -> (i32, i32) {
    %c0_i32 = arith.constant 0 : i32
    return %arg0, %arg1 : i32, i32
  }
  func.func @transform_1(%arg0: i32, %arg1: i32) -> (i32, i32) {
    %c0_i32 = arith.constant 0 : i32
    %c0_i32_0 = arith.constant 0 : i32
    %c0_i32_1 = arith.constant 0 : i32
    return %c0_i32, %c0_i32_0 : i32, i32
  }
  func.func @transform_2(%arg0: i32, %arg1: i32) -> (i32, i32) {
    %c0_i32 = arith.constant 0 : i32
    %c0_i32_0 = arith.constant 0 : i32
    %c0_i32_1 = arith.constant 0 : i32
    return %c0_i32, %c0_i32_0 : i32, i32
  }
  func.func @transform_3(%arg0: i32, %arg1: i32) -> (i32, i32) {
    %c0_i32 = arith.constant 0 : i32
    %c0_i32_0 = arith.constant 0 : i32
    %c0_i32_1 = arith.constant 0 : i32
    return %c0_i32, %c0_i32_0 : i32, i32
  }
  func.func @transform_4(%arg0: i32, %arg1: i32) -> (i32, i32) {
    %c0_i32 = arith.constant 0 : i32
    %c0_i32_0 = arith.constant 0 : i32
    %c0_i32_1 = arith.constant 0 : i32
    return %c0_i32, %c0_i32_0 : i32, i32
  }
  func.func @transform_5(%arg0: i32, %arg1: i32) -> (i32, i32) {
    %c0_i32 = arith.constant 0 : i32
    %c0_i32_0 = arith.constant 0 : i32
    %c0_i32_1 = arith.constant 0 : i32
    return %c0_i32, %c0_i32_0 : i32, i32
  }
  func.func @transform_6(%arg0: i32, %arg1: i32) -> (i32, i32) {
    %c0_i32 = arith.constant 0 : i32
    %c0_i32_0 = arith.constant 0 : i32
    %c0_i32_1 = arith.constant 0 : i32
    return %c0_i32, %c0_i32_0 : i32, i32
  }
  func.func @transform_7(%arg0: i32, %arg1: i32) -> (i32, i32) {
    %c0_i32 = arith.constant 0 : i32
    %c0_i32_0 = arith.constant 0 : i32
    return %arg0, %c0_i32 : i32, i32
  }
}

module attributes {stable_mosaic.version = 11 : i64} {
  func.func @_expert_kernel(%arg0: i32, %arg1: i32, %arg2: memref<8x32xf32, #tpu.memory_space<vmem>>, %arg3: memref<32x64xf32, #tpu.memory_space<vmem>>, %arg4: memref<1x64xf32, #tpu.memory_space<vmem>>, %arg5: memref<1x64xf32, #tpu.memory_space<vmem>>, %arg6: memref<1x64xf32, #tpu.memory_space<vmem>>, %arg7: memref<64x128xf32, #tpu.memory_space<vmem>>, %arg8: memref<1x128xf32, #tpu.memory_space<vmem>>, %arg9: memref<8x128xf32, #tpu.memory_space<vmem>>, %arg10: memref<8x64xf32, #tpu.memory_space<vmem>>) attributes {dimension_semantics = [#tpu.dimension_semantics<parallel>, #tpu.dimension_semantics<arbitrary>], iteration_bounds = array<i64: 1, 1>, scalar_prefetch = 0 : i64, scratch_operands = 1 : i64, tpu.core_type = #tpu.core_type<tc>, window_params = [{transform_indices = @transform_0, window_bounds = array<i64: 8, 32>}, {pipeline_mode = #tpu.pipeline_mode<synchronous>, transform_indices = @transform_1, window_bounds = array<i64: 32, 64>}, {pipeline_mode = #tpu.pipeline_mode<synchronous>, transform_indices = @transform_2, window_bounds = array<i64: 1, 64>}, {pipeline_mode = #tpu.pipeline_mode<synchronous>, transform_indices = @transform_3, window_bounds = array<i64: 1, 64>}, {pipeline_mode = #tpu.pipeline_mode<synchronous>, transform_indices = @transform_4, window_bounds = array<i64: 1, 64>}, {pipeline_mode = #tpu.pipeline_mode<synchronous>, transform_indices = @transform_5, window_bounds = array<i64: 64, 128>}, {pipeline_mode = #tpu.pipeline_mode<synchronous>, transform_indices = @transform_6, window_bounds = array<i64: 1, 128>}, {transform_indices = @transform_7, window_bounds = array<i64: 8, 128>}]} {
    %c0_i32 = arith.constant 0 : i32
    %0 = arith.cmpi eq, %arg1, %c0_i32 : i32
    %1 = arith.extui %0 : i1 to i32
    %c0_i32_0 = arith.constant 0 : i32
    %2 = arith.cmpi ne, %1, %c0_i32_0 : i32
    scf.if %2 {
      %cst_10 = arith.constant 0.000000e+00 : f32
      %12 = vector.broadcast %cst_10 : f32 to vector<8x64xf32>
      %c0_11 = arith.constant 0 : index
      %c0_12 = arith.constant 0 : index
      %13 = vector.load %arg10[%c0_11, %c0_12] : memref<8x64xf32, #tpu.memory_space<vmem>>, vector<8x64xf32>
      tpu.vector_store %arg10[%c0_11, %c0_12], %12 {strides = array<i32>} : memref<8x64xf32, #tpu.memory_space<vmem>>, vector<8x64xf32>,
    } else {
    }
    %c0 = arith.constant 0 : index
    %c0_1 = arith.constant 0 : index
    %3 = vector.load %arg10[%c0, %c0_1] : memref<8x64xf32, #tpu.memory_space<vmem>>, vector<8x64xf32>
    %c0_2 = arith.constant 0 : index
    %c0_3 = arith.constant 0 : index
    %4 = vector.load %arg2[%c0_2, %c0_3] : memref<8x32xf32, #tpu.memory_space<vmem>>, vector<8x32xf32>
    %c0_4 = arith.constant 0 : index
    %c0_5 = arith.constant 0 : index
    %5 = vector.load %arg3[%c0_4, %c0_5] : memref<32x64xf32, #tpu.memory_space<vmem>>, vector<32x64xf32>
    %cst = arith.constant dense<0.000000e+00> : vector<8x64xf32>
    %6 = tpu.matmul %4, %5, %cst {dimension_numbers = #tpu.dot_dimension_numbers<[1], [0], [0], [1], [0, 0, 1, 1], [], []>} : vector<8x32xf32>, vector<32x64xf32>, vector<8x64xf32> -> vector<8x64xf32>
    %7 = arith.addf %3, %6 : vector<8x64xf32>
    %c0_6 = arith.constant 0 : index
    %c0_7 = arith.constant 0 : index
    %8 = vector.load %arg10[%c0_6, %c0_7] : memref<8x64xf32, #tpu.memory_space<vmem>>, vector<8x64xf32>
    tpu.vector_store %arg10[%c0_6, %c0_7], %7 {strides = array<i32>} : memref<8x64xf32, #tpu.memory_space<vmem>>, vector<8x64xf32>,
    %c0_i32_8 = arith.constant 0 : i32
    %9 = arith.cmpi eq, %arg1, %c0_i32_8 : i32
    %10 = arith.extui %9 : i1 to i32
    %c0_i32_9 = arith.constant 0 : i32
    %11 = arith.cmpi ne, %10, %c0_i32_9 : i32
    scf.if %11 {
      %c0_10 = arith.constant 0 : index
      %c0_11 = arith.constant 0 : index
      %12 = vector.load %arg4[%c0_10, %c0_11] : memref<1x64xf32, #tpu.memory_space<vmem>>, vector<1x64xf32>
      %c0_12 = arith.constant 0 : index
      %c0_13 = arith.constant 0 : index
      %13 = vector.load %arg5[%c0_12, %c0_13] : memref<1x64xf32, #tpu.memory_space<vmem>>, vector<1x64xf32>
      %c0_14 = arith.constant 0 : index
      %c0_15 = arith.constant 0 : index
      %14 = vector.load %arg6[%c0_14, %c0_15] : memref<1x64xf32, #tpu.memory_space<vmem>>, vector<1x64xf32>
      %c0_16 = arith.constant 0 : index
      %c0_17 = arith.constant 0 : index
      %15 = vector.load %arg8[%c0_16, %c0_17] : memref<1x128xf32, #tpu.memory_space<vmem>>, vector<1x128xf32>
      %c0_18 = arith.constant 0 : index
      %c0_19 = arith.constant 0 : index
      %16 = vector.load %arg10[%c0_18, %c0_19] : memref<8x64xf32, #tpu.memory_space<vmem>>, vector<8x64xf32>
      %17 = vector.broadcast %12 : vector<1x64xf32> to vector<8x64xf32>
      %18 = arith.addf %16, %17 : vector<8x64xf32>
      %cst_20 = arith.constant 5.000000e-01 : f32
      %19 = vector.broadcast %cst_20 : f32 to vector<8x64xf32>
      %20 = arith.mulf %19, %18 : vector<8x64xf32>
      %cst_21 = arith.constant 0.707106769 : f32
      %21 = vector.broadcast %cst_21 : f32 to vector<8x64xf32>
      %22 = arith.mulf %18, %21 : vector<8x64xf32>
      %23 = math.erf %22 : vector<8x64xf32>
      %cst_22 = arith.constant 1.000000e+00 : f32
      %24 = vector.broadcast %cst_22 : f32 to vector<8x64xf32>
      %25 = arith.addf %24, %23 : vector<8x64xf32>
      %26 = arith.mulf %20, %25 : vector<8x64xf32>
      %cst_23 = arith.constant dense<0.000000e+00> : vector<8xf32>
      %27 = vector.multi_reduction <add>, %26, %cst_23 [1] : vector<8x64xf32> to vector<8xf32>
      %28 = vector.shape_cast %27 : vector<8xf32> to vector<8x1xf32>
      %cst_24 = arith.constant 6.400000e+01 : f32
      %29 = vector.broadcast %cst_24 : f32 to vector<8x1xf32>
      %30 = arith.divf %28, %29 : vector<8x1xf32>
      %31 = vector.broadcast %30 : vector<8x1xf32> to vector<8x64xf32>
      %32 = arith.subf %26, %31 : vector<8x64xf32>
      %33 = arith.mulf %32, %32 : vector<8x64xf32>
      %cst_25 = arith.constant dense<0.000000e+00> : vector<8xf32>
      %34 = vector.multi_reduction <add>, %33, %cst_25 [1] : vector<8x64xf32> to vector<8xf32>
      %35 = vector.shape_cast %34 : vector<8xf32> to vector<8x1xf32>
      %cst_26 = arith.constant 6.400000e+01 : f32
      %36 = vector.broadcast %cst_26 : f32 to vector<8x1xf32>
      %37 = arith.divf %35, %36 : vector<8x1xf32>
      %cst_27 = arith.constant 9.99999974E-6 : f32
      %38 = vector.broadcast %cst_27 : f32 to vector<8x1xf32>
      %39 = arith.addf %37, %38 : vector<8x1xf32>
      %40 = math.rsqrt %39 : vector<8x1xf32>
      %41 = vector.broadcast %40 : vector<8x1xf32> to vector<8x64xf32>
      %42 = arith.mulf %32, %41 : vector<8x64xf32>
      %43 = vector.broadcast %13 : vector<1x64xf32> to vector<8x64xf32>
      %44 = arith.mulf %42, %43 : vector<8x64xf32>
      %45 = vector.broadcast %14 : vector<1x64xf32> to vector<8x64xf32>
      %46 = arith.addf %44, %45 : vector<8x64xf32>
      %c0_28 = arith.constant 0 : index
      %c0_29 = arith.constant 0 : index
      %47 = vector.load %arg7[%c0_28, %c0_29] : memref<64x128xf32, #tpu.memory_space<vmem>>, vector<64x128xf32>
      %cst_30 = arith.constant dense<0.000000e+00> : vector<8x128xf32>
      %48 = tpu.matmul %46, %47, %cst_30 {dimension_numbers = #tpu.dot_dimension_numbers<[1], [0], [0], [1], [0, 0, 1, 1], [], []>} : vector<8x64xf32>, vector<64x128xf32>, vector<8x128xf32> -> vector<8x128xf32>
      %49 = vector.broadcast %15 : vector<1x128xf32> to vector<8x128xf32>
      %50 = arith.addf %48, %49 : vector<8x128xf32>
      %c0_31 = arith.constant 0 : index
      %c0_32 = arith.constant 0 : index
      %51 = vector.load %arg9[%c0_31, %c0_32] : memref<8x128xf32, #tpu.memory_space<vmem>>, vector<8x128xf32>
      tpu.vector_store %arg9[%c0_31, %c0_32], %50 {strides = array<i32>} : memref<8x128xf32, #tpu.memory_space<vmem>>, vector<8x128xf32>,
    } else {
    }
    return
  }
  func.func @transform_0(%arg0: i32, %arg1: i32) -> (i32, i32) {
    %c0_i32 = arith.constant 0 : i32
    return %arg0, %arg1 : i32, i32
  }
  func.func @transform_1(%arg0: i32, %arg1: i32) -> (i32, i32) {
    %c0_i32 = arith.constant 0 : i32
    %c0_i32_0 = arith.constant 0 : i32
    %c0_i32_1 = arith.constant 0 : i32
    return %c0_i32, %c0_i32_0 : i32, i32
  }
  func.func @transform_2(%arg0: i32, %arg1: i32) -> (i32, i32) {
    %c0_i32 = arith.constant 0 : i32
    %c0_i32_0 = arith.constant 0 : i32
    %c0_i32_1 = arith.constant 0 : i32
    return %c0_i32, %c0_i32_0 : i32, i32
  }
  func.func @transform_3(%arg0: i32, %arg1: i32) -> (i32, i32) {
    %c0_i32 = arith.constant 0 : i32
    %c0_i32_0 = arith.constant 0 : i32
    %c0_i32_1 = arith.constant 0 : i32
    return %c0_i32, %c0_i32_0 : i32, i32
  }
  func.func @transform_4(%arg0: i32, %arg1: i32) -> (i32, i32) {
    %c0_i32 = arith.constant 0 : i32
    %c0_i32_0 = arith.constant 0 : i32
    %c0_i32_1 = arith.constant 0 : i32
    return %c0_i32, %c0_i32_0 : i32, i32
  }
  func.func @transform_5(%arg0: i32, %arg1: i32) -> (i32, i32) {
    %c0_i32 = arith.constant 0 : i32
    %c0_i32_0 = arith.constant 0 : i32
    %c0_i32_1 = arith.constant 0 : i32
    return %c0_i32, %c0_i32_0 : i32, i32
  }
  func.func @transform_6(%arg0: i32, %arg1: i32) -> (i32, i32) {
    %c0_i32 = arith.constant 0 : i32
    %c0_i32_0 = arith.constant 0 : i32
    %c0_i32_1 = arith.constant 0 : i32
    return %c0_i32, %c0_i32_0 : i32, i32
  }
  func.func @transform_7(%arg0: i32, %arg1: i32) -> (i32, i32) {
    %c0_i32 = arith.constant 0 : i32
    %c0_i32_0 = arith.constant 0 : i32
    return %arg0, %c0_i32 : i32, i32
  }
}

</mosaic_0001>

<llo_original>
// kernel: tpu_custom_call.1
$region0: #{tpu_custom_call.1}
  #allocation0 [shape = 'u32[]', space=smem, size = 0x4, offset = 0x4, fixed_abs, tag = 'smem constant byte address 0x4 - core index']
  #allocation1 [shape = 'u32[144,128]{1,0:T(1,128)}', space=vmem, size = 0x12000, scoped, tag = 'internal scratch']
  #allocation2 [shape = 'f32[8,64]{1,0:T(8,128)}', space=vmem, size = 0x1000, scoped, tag = 'scratch operand']
  %s0 = inlined_call_operand.hbm [shape: f32[8,32], index: 0, kind: input, shape index: {}]
  %s1 = inlined_call_operand.hbm [shape: f32[32,64], index: 1, kind: input, shape index: {}]
  %s2 = inlined_call_operand.vmem [shape: f32[1,64], index: 2, kind: input, shape index: {}]
  %s3 = inlined_call_operand.vmem [shape: f32[1,64], index: 3, kind: input, shape index: {}]
  %s4 = inlined_call_operand.vmem [shape: f32[1,64], index: 4, kind: input, shape index: {}]
  %s5 = inlined_call_operand.hbm [shape: f32[64,128], index: 5, kind: input, shape index: {}]
  %s6 = inlined_call_operand.vmem [shape: f32[1,128], index: 6, kind: input, shape index: {}]
  %s7 = inlined_call_operand.hbm [shape: f32[8,128], index: 7, kind: output, shape index: {}]
  %s8 = sld [smem:[#allocation0]]
  $region58: #{tpu_custom_call.1} parent=0
    _
  %s10 = ssub.s32 1, %s8
  %s11 = scalar_select 0, %s10, %s8
  $region1: #{tpu_custom_call.1} parent=0
    #allocation3 [shape = 'u8[4096]{0}', space=vmem, size = 0x1000, scoped, tag = 'input window, operand 0, single buffered']
    #allocation4 [shape = 's32[1]{0}', space=sflag, size = 0x4, scoped, tag = 'scoped memory for tpu_custom_call.1']
    #allocation5 [shape = 's32[1]{0}', space=sflag, size = 0x4, scoped, tag = 'scoped memory for tpu_custom_call.1']
    #allocation6 [shape = 'u8[16384]{0}', space=vmem, size = 0x4000, scoped, tag = 'input window, operand 1, single buffered']
    #allocation7 [shape = 's32[1]{0}', space=sflag, size = 0x4, scoped, tag = 'scoped memory for tpu_custom_call.1']
    #allocation8 [shape = 'u8[32768]{0}', space=vmem, size = 0x8000, scoped, tag = 'input window, operand 5, single buffered']
    #allocation9 [shape = 'u8[4096]{0}', space=vmem, size = 0x1000, scoped, tag = 'output window, operand 0, single buffered']
    %12 = vsyncpa [#allocation4], 0
    %13 = vsyncpa [#allocation7], 0
    %14 = vsyncpa [#allocation5], 0
    // Predicated region
    $region2: #{tpu_custom_call.1} parent=1 // pred_check
      _
    $region3: #{tpu_custom_call.1} parent=1 // pred_check_branch
      %16 = sbr.rel (0) target = $region5
    $region4: #{tpu_custom_call.1} parent=1 // pred_region
      %s18 = ssub.s32 128, 128
      %19 = vsyncadd [#allocation4], %s18
      %s21 = sshll.u32 [#allocation3], 4
      %s22 = int_to_ptr.vmem [resolvable:$true] %s21
      %24 = dma.hbm_to_vmem [thread:$0]  %s0, 128, %s22, [#allocation4]
    $region5: #{tpu_custom_call.1} parent=1 // pred_fallthru
      _
    // Predicated region
    $region6: #{tpu_custom_call.1} parent=1 // pred_check
      _
    $region7: #{tpu_custom_call.1} parent=1 // pred_check_branch
      %26 = sbr.rel (0) target = $region9
    $region8: #{tpu_custom_call.1} parent=1 // pred_region
      %s28 = ssub.s32 512, 512
      %29 = vsyncadd [#allocation7], %s28
      %s30 = sshll.u32 [#allocation6], 4
      %s31 = int_to_ptr.vmem [resolvable:$true] %s30
      %36 = dma.hbm_to_vmem [thread:$0]  %s1, 512, %s31, [#allocation7], 128, 128, 8
    $region9: #{tpu_custom_call.1} parent=1 // pred_fallthru
      _
    // Predicated region
    $region10: #{tpu_custom_call.1} parent=1 // pred_check
      _
    $region11: #{tpu_custom_call.1} parent=1 // pred_check_branch
      %38 = sbr.rel (0) target = $region13
    $region12: #{tpu_custom_call.1} parent=1 // pred_region
      _
    $region13: #{tpu_custom_call.1} parent=1 // pred_fallthru
      _
    // Predicated region
    $region14: #{tpu_custom_call.1} parent=1 // pred_check
      _
    $region15: #{tpu_custom_call.1} parent=1 // pred_check_branch
      %40 = sbr.rel (0) target = $region17
    $region16: #{tpu_custom_call.1} parent=1 // pred_region
      _
    $region17: #{tpu_custom_call.1} parent=1 // pred_fallthru
      _
    // Predicated region
    $region18: #{tpu_custom_call.1} parent=1 // pred_check
      _
    $region19: #{tpu_custom_call.1} parent=1 // pred_check_branch
      %42 = sbr.rel (0) target = $region21
    $region20: #{tpu_custom_call.1} parent=1 // pred_region
      _
    $region21: #{tpu_custom_call.1} parent=1 // pred_fallthru
      _
    // Predicated region
    $region22: #{tpu_custom_call.1} parent=1 // pred_check
      _
    $region23: #{tpu_custom_call.1} parent=1 // pred_check_branch
      %44 = sbr.rel (0) target = $region25
    $region24: #{tpu_custom_call.1} parent=1 // pred_region
      %s46 = ssub.s32 1024, 1024
      %47 = vsyncadd [#allocation7], %s46
      %s48 = sshll.u32 [#allocation8], 4
      %s49 = int_to_ptr.vmem [resolvable:$true] %s48
      %54 = dma.hbm_to_vmem [thread:$0]  %s5, 1024, %s49, [#allocation7], 128, 128, 8
    $region25: #{tpu_custom_call.1} parent=1 // pred_fallthru
      _
    // Predicated region
    $region26: #{tpu_custom_call.1} parent=1 // pred_check
      _
    $region27: #{tpu_custom_call.1} parent=1 // pred_check_branch
      %56 = sbr.rel (0) target = $region29
    $region28: #{tpu_custom_call.1} parent=1 // pred_region
      _
    $region29: #{tpu_custom_call.1} parent=1 // pred_fallthru
      _
    // Predicated region
    $region30: #{tpu_custom_call.1} parent=1 // pred_check
      _
    $region31: #{tpu_custom_call.1} parent=1 // pred_check_branch
      %58 = sbr.rel (0) target = $region33
    $region32: #{tpu_custom_call.1} parent=1 // pred_region
      %59 = dma.done [#allocation4], 128
    $region33: #{tpu_custom_call.1} parent=1 // pred_fallthru
      _
    // Predicated region
    $region34: #{tpu_custom_call.1} parent=1 // pred_check
      _
    $region35: #{tpu_custom_call.1} parent=1 // pred_check_branch
      %61 = sbr.rel (0) target = $region37
    $region36: #{tpu_custom_call.1} parent=1 // pred_region
      %62 = dma.done [#allocation7], 512
    $region37: #{tpu_custom_call.1} parent=1 // pred_fallthru
      _
    // Predicated region
    $region38: #{tpu_custom_call.1} parent=1 // pred_check
      _
    $region39: #{tpu_custom_call.1} parent=1 // pred_check_branch
      %64 = sbr.rel (0) target = $region41
    $region40: #{tpu_custom_call.1} parent=1 // pred_region
      %65 = dma.done [#allocation7], 1024
    $region41: #{tpu_custom_call.1} parent=1 // pred_fallthru
      _
    %p66 = scmp.eq.s32.totalorder 0, 0
    // Predicated region
    $region42: #{tpu_custom_call.1} parent=1 // pred_check
      %p67 = pneg %p66
    $region43: #{tpu_custom_call.1} parent=1 // pred_check_branch
      %69 = sbr.rel (%p67) target = $region45
    $region44: #{tpu_custom_call.1} parent=1 // pred_region
      %vm70 = vcmask 523264
      %71 = vst.msk [vmem:[#allocation2] sm:$0xff] %vm70, 0.0
    $region45: #{tpu_custom_call.1} parent=1 // pred_fallthru
      _
    %v72 = vld [vmem:[#allocation2] sm:$0xff]
    %v73 = vld [vmem:[#allocation3] sm:$0xff]
    %v74 = vld [vmem:[#allocation6] sm:$0xff]
    %v75 = vld [vmem:[#allocation6 + $0x8] sm:$0xff]
    %v76 = vld [vmem:[#allocation6 + $0x10] sm:$0xff]
    %v77 = vld [vmem:[#allocation6 + $0x18] sm:$0xff]
    %vm78 = vcmask 261120
    %v80 = vsel %vm78, %v73, 0
    %82 = vmatprep.subr.mxu0 0.0
    %83 = vmatpush1.msra.mxu0 %v74
    %84 = vmatprep.subr.mxu0 0.0
    %85 = vmatpush1.msra.mxu0 %v75
    %86 = vmatprep.subr.mxu0 0.0
    %87 = vmatpush1.msra.mxu0 %v76
    %88 = vmatprep.subr.mxu0 0.0
    %89 = vmatpush1.msra.mxu0 %v77
    %90 = vmatprep.subr.mxu0 0.0
    %91 = vmatpush1.msra.mxu0 0.0
    %92 = vmatprep.subr.mxu0 0.0
    %93 = vmatpush1.msra.mxu0 0.0
    %94 = vmatprep.subr.mxu0 0.0
    %95 = vmatpush1.msra.mxu0 0.0
    %96 = vmatprep.subr.mxu0 0.0
    %97 = vmatpush1.msra.mxu0 0.0
    %98 = vmatprep.subr.mxu0 0.0
    %99 = vmatpush1.msra.mxu0 0.0
    %100 = vmatprep.subr.mxu0 0.0
    %101 = vmatpush1.msra.mxu0 0.0
    %102 = vmatprep.subr.mxu0 0.0
    %103 = vmatpush1.msra.mxu0 0.0
    %104 = vmatprep.subr.mxu0 0.0
    %105 = vmatpush1.msra.mxu0 0.0
    %106 = vmatprep.subr.mxu0 0.0
    %107 = vmatpush1.msra.mxu0 0.0
    %108 = vmatprep.subr.mxu0 0.0
    %109 = vmatpush1.msra.mxu0 0.0
    %110 = vmatprep.subr.mxu0 0.0
    %111 = vmatpush1.msra.mxu0 0.0
    %112 = vmatprep.subr.mxu0 0.0
    %113 = vmatpush1.msra.mxu0 0.0
    %114 = vmatprep.subr.mxu0 0.0
    %115 = vmatpush1.msra.mxu0 0.0
    %116 = vmatprep.subr.mxu0 0.0
    %117 = vmatpush1.msra.mxu0 0.0
    %118 = vmatprep.subr.mxu0 0.0
    %119 = vmatpush1.msra.mxu0 0.0
    %120 = vmatprep.subr.mxu0 0.0
    %121 = vmatpush1.msra.mxu0 0.0
    %122 = vmatprep.subr.mxu0 0.0
    %123 = vmatpush1.msra.mxu0 0.0
    %124 = vmatprep.subr.mxu0 0.0
    %125 = vmatpush1.msra.mxu0 0.0
    %126 = vmatprep.subr.mxu0 0.0
    %127 = vmatpush1.msra.mxu0 0.0
    %128 = vmatprep.subr.mxu0 0.0
    %129 = vmatpush1.msra.mxu0 0.0
    %130 = vmatprep.subr.mxu0 0.0
    %131 = vmatpush1.msra.mxu0 0.0
    %132 = vmatprep.subr.mxu0 0.0
    %133 = vmatpush1.msra.mxu0 0.0
    %134 = vmatprep.subr.mxu0 0.0
    %135 = vmatpush1.msra.mxu0 0.0
    %136 = vmatprep.subr.mxu0 0.0
    %137 = vmatpush1.msra.mxu0 0.0
    %138 = vmatprep.subr.mxu0 0.0
    %139 = vmatpush1.msra.mxu0 0.0
    %140 = vmatprep.subr.mxu0 0.0
    %141 = vmatpush1.msra.mxu0 0.0
    %142 = vmatprep.subr.mxu0 0.0
    %143 = vmatpush1.msra.mxu0 0.0
    %144 = vmatprep.subr.mxu0 0.0
    %145 = vmatpush1.msra.mxu0 0.0
    %146 = vmatprep.mubr.f32.mxu0 0.0
    %147 = vmatmul.mubr.f32.gmra.mrb[0].mxu0 %v80
    %v148 = vpop.f32.mrb[0].mxu0
    %v149 = vadd.f32 0.0, %v148
    %v150 = vpop.f32.mrb[0].mxu0
    %151 = vdwg.mxu0
    %v152 = vadd.f32 %v72, %v149
    %vm153 = vcmask 523264
    %154 = vst.msk [vmem:[#allocation2] sm:$0xff] %vm153, %v152
    // Predicated region
    $region46: #{tpu_custom_call.1} parent=1 // pred_check
      %p155 = pneg %p66
    $region47: #{tpu_custom_call.1} parent=1 // pred_check_branch
      %157 = sbr.rel (%p155) target = $region49
    $region48: #{tpu_custom_call.1} parent=1 // pred_region
      %v158 = vld [vmem:[%s2] sm:$0x1]
      %v159 = vld [vmem:[%s3] sm:$0x1]
      %v160 = vld [vmem:[%s4] sm:$0x1]
      %v161 = vld [vmem:[%s6] sm:$0x1]
      %v162 = vld [vmem:[#allocation2] sm:$0xff]
      %v164 = vlaneseq
      %v165 = vshrl.u32 %v164, 7
      %v166 = vsub.s32 0, %v165
      %v167 = vrot.slane %v158, %v166
      %v169 = vadd.f32 %v162, %v167
      %v170 = vmul.f32 %v169, 0.5
      %v171 = vmul.f32 %v169, 0.70710677
      %v172 = verf.f32.pop %v171
      %v173 = vadd.f32 %v172, 1.0
      %v174 = vmul.f32 %v170, %v173
      %v175 = vsel %vm153, %v174, 0.0
      %176 = vadd.xlane.f32.xlu0 %v175
      %v177 = vpop.xlane.xlu0 %176
      %v178 = vrcp.pop 64.0
      %v179 = vmul.f32 %v177, %v178
      %v180 = vsub.f32 %v174, %v179
      %v181 = vmul.f32 %v180, %v180
      %v182 = vsel %vm153, %v181, 0.0
      %183 = vadd.xlane.f32.xlu0 %v182
      %v184 = vpop.xlane.xlu0 %183
      %v185 = vmul.f32 %v184, %v178
      %v186 = vadd.f32 %v185, 1e-05
      %v187 = vrsqrt.pop %v186
      %v188 = vmul.f32 %v180, %v187
      %v190 = vlaneseq
      %v191 = vshrl.u32 %v190, 7
      %v192 = vsub.s32 0, %v191
      %v193 = vrot.slane %v159, %v192
      %v195 = vmul.f32 %v188, %v193
      %v197 = vlaneseq
      %v198 = vshrl.u32 %v197, 7
      %v199 = vsub.s32 0, %v198
      %v200 = vrot.slane %v160, %v199
      %v202 = vadd.f32 %v195, %v200
      %v203 = vld [vmem:[#allocation8] sm:$0xff]
      %v204 = vld [vmem:[#allocation8 + $0x8] sm:$0xff]
      %v205 = vld [vmem:[#allocation8 + $0x10] sm:$0xff]
      %v206 = vld [vmem:[#allocation8 + $0x18] sm:$0xff]
      %v207 = vld [vmem:[#allocation8 + $0x20] sm:$0xff]
      %v208 = vld [vmem:[#allocation8 + $0x28] sm:$0xff]
      %v209 = vld [vmem:[#allocation8 + $0x30] sm:$0xff]
      %v210 = vld [vmem:[#allocation8 + $0x38] sm:$0xff]
      %v212 = vlaneseq
      %v213 = vshrl.u32 %v212, 7
      %v214 = vsub.s32 0, %v213
      %v215 = vrot.slane %v161, %v214
      %v218 = vsel %vm153, %v202, 0
      %220 = vmatprep.subr.mxu0 0.0
      %221 = vmatpush1.msra.mxu0 %v203
      %222 = vmatprep.subr.mxu0 0.0
      %223 = vmatpush1.msra.mxu0 %v204
      %224 = vmatprep.subr.mxu0 0.0
      %225 = vmatpush1.msra.mxu0 %v205
      %226 = vmatprep.subr.mxu0 0.0
      %227 = vmatpush1.msra.mxu0 %v206
      %228 = vmatprep.subr.mxu0 0.0
      %229 = vmatpush1.msra.mxu0 %v207
      %230 = vmatprep.subr.mxu0 0.0
      %231 = vmatpush1.msra.mxu0 %v208
      %232 = vmatprep.subr.mxu0 0.0
      %233 = vmatpush1.msra.mxu0 %v209
      %234 = vmatprep.subr.mxu0 0.0
      %235 = vmatpush1.msra.mxu0 %v210
      %236 = vmatprep.subr.mxu0 0.0
      %237 = vmatpush1.msra.mxu0 0.0
      %238 = vmatprep.subr.mxu0 0.0
      %239 = vmatpush1.msra.mxu0 0.0
      %240 = vmatprep.subr.mxu0 0.0
      %241 = vmatpush1.msra.mxu0 0.0
      %242 = vmatprep.subr.mxu0 0.0
      %243 = vmatpush1.msra.mxu0 0.0
      %244 = vmatprep.subr.mxu0 0.0
      %245 = vmatpush1.msra.mxu0 0.0
      %246 = vmatprep.subr.mxu0 0.0
      %247 = vmatpush1.msra.mxu0 0.0
      %248 = vmatprep.subr.mxu0 0.0
      %249 = vmatpush1.msra.mxu0 0.0
      %250 = vmatprep.subr.mxu0 0.0
      %251 = vmatpush1.msra.mxu0 0.0
      %252 = vmatprep.subr.mxu0 0.0
      %253 = vmatpush1.msra.mxu0 0.0
      %254 = vmatprep.subr.mxu0 0.0
      %255 = vmatpush1.msra.mxu0 0.0
      %256 = vmatprep.subr.mxu0 0.0
      %257 = vmatpush1.msra.mxu0 0.0
      %258 = vmatprep.subr.mxu0 0.0
      %259 = vmatpush1.msra.mxu0 0.0
      %260 = vmatprep.subr.mxu0 0.0
      %261 = vmatpush1.msra.mxu0 0.0
      %262 = vmatprep.subr.mxu0 0.0
      %263 = vmatpush1.msra.mxu0 0.0
      %264 = vmatprep.subr.mxu0 0.0
      %265 = vmatpush1.msra.mxu0 0.0
      %266 = vmatprep.subr.mxu0 0.0
      %267 = vmatpush1.msra.mxu0 0.0
      %268 = vmatprep.subr.mxu0 0.0
      %269 = vmatpush1.msra.mxu0 0.0
      %270 = vmatprep.subr.mxu0 0.0
      %271 = vmatpush1.msra.mxu0 0.0
      %272 = vmatprep.subr.mxu0 0.0
      %273 = vmatpush1.msra.mxu0 0.0
      %274 = vmatprep.subr.mxu0 0.0
      %275 = vmatpush1.msra.mxu0 0.0
      %276 = vmatprep.subr.mxu0 0.0
      %277 = vmatpush1.msra.mxu0 0.0
      %278 = vmatprep.subr.mxu0 0.0
      %279 = vmatpush1.msra.mxu0 0.0
      %280 = vmatprep.subr.mxu0 0.0
      %281 = vmatpush1.msra.mxu0 0.0
      %282 = vmatprep.subr.mxu0 0.0
      %283 = vmatpush1.msra.mxu0 0.0
      %284 = vmatprep.mubr.f32.mxu0 0.0
      %285 = vmatmul.mubr.f32.gmra.mrb[0].mxu0 %v218
      %v286 = vpop.f32.mrb[0].mxu0
      %v287 = vadd.f32 %v215, %v286
      %v288 = vpop.f32.mrb[0].mxu0
      %289 = vdwg.mxu0
      %290 = vst [vmem:[#allocation9] sm:$0xff] %v287
    $region49: #{tpu_custom_call.1} parent=1 // pred_fallthru
      _
    // Predicated region
    $region50: #{tpu_custom_call.1} parent=1 // pred_check
      _
    $region51: #{tpu_custom_call.1} parent=1 // pred_check_branch
      %292 = sbr.rel (0) target = $region53
    $region52: #{tpu_custom_call.1} parent=1 // pred_region
      %s294 = ssub.s32 128, 128
      %295 = vsyncadd [#allocation5], %s294
      %s297 = sshll.u32 [#allocation9], 4
      %s298 = int_to_ptr.vmem [resolvable:$true] %s297
      %300 = dma.vmem_to_hbm [thread:$0]  %s298, 128, %s7, [#allocation5]
    $region53: #{tpu_custom_call.1} parent=1 // pred_fallthru
      _
    // Predicated region
    $region54: #{tpu_custom_call.1} parent=1 // pred_check
      _
    $region55: #{tpu_custom_call.1} parent=1 // pred_check_branch
      %302 = sbr.rel (0) target = $region57
    $region56: #{tpu_custom_call.1} parent=1 // pred_region
      %303 = dma.done [#allocation5], 128
    $region57: #{tpu_custom_call.1} parent=1 // pred_fallthru
      _
    %304 = vsyncpa [#allocation4], 1
    %305 = vsyncpa [#allocation7], 1
    %306 = vsyncpa [#allocation5], 1

// kernel: tpu_custom_call.1
$region0: #{tpu_custom_call.1}
  #allocation0 [shape = 'u32[]', space=smem, size = 0x4, offset = 0x4, fixed_abs, tag = 'smem constant byte address 0x4 - core index']
  #allocation1 [shape = 'u32[144,128]{1,0:T(1,128)}', space=vmem, size = 0x12000, scoped, tag = 'internal scratch']
  #allocation2 [shape = 'f32[8,64]{1,0:T(8,128)}', space=vmem, size = 0x1000, scoped, tag = 'scratch operand']
  %s0 = inlined_call_operand.hbm [shape: f32[8,32], index: 0, kind: input, shape index: {}]
  %s1 = inlined_call_operand.hbm [shape: f32[32,64], index: 1, kind: input, shape index: {}]
  %s2 = inlined_call_operand.vmem [shape: f32[1,64], index: 2, kind: input, shape index: {}]
  %s3 = inlined_call_operand.vmem [shape: f32[1,64], index: 3, kind: input, shape index: {}]
  %s4 = inlined_call_operand.vmem [shape: f32[1,64], index: 4, kind: input, shape index: {}]
  %s5 = inlined_call_operand.hbm [shape: f32[64,128], index: 5, kind: input, shape index: {}]
  %s6 = inlined_call_operand.vmem [shape: f32[1,128], index: 6, kind: input, shape index: {}]
  %s7 = inlined_call_operand.hbm [shape: f32[8,128], index: 7, kind: output, shape index: {}]
  %s8 = sld [smem:[#allocation0]]
  $region58: #{tpu_custom_call.1} parent=0
    _
  %s10 = ssub.s32 1, %s8
  %s11 = scalar_select 0, %s10, %s8
  $region1: #{tpu_custom_call.1} parent=0
    #allocation3 [shape = 'u8[4096]{0}', space=vmem, size = 0x1000, scoped, tag = 'input window, operand 0, single buffered']
    #allocation4 [shape = 's32[1]{0}', space=sflag, size = 0x4, scoped, tag = 'scoped memory for tpu_custom_call.1']
    #allocation5 [shape = 's32[1]{0}', space=sflag, size = 0x4, scoped, tag = 'scoped memory for tpu_custom_call.1']
    #allocation6 [shape = 'u8[16384]{0}', space=vmem, size = 0x4000, scoped, tag = 'input window, operand 1, single buffered']
    #allocation7 [shape = 's32[1]{0}', space=sflag, size = 0x4, scoped, tag = 'scoped memory for tpu_custom_call.1']
    #allocation8 [shape = 'u8[32768]{0}', space=vmem, size = 0x8000, scoped, tag = 'input window, operand 5, single buffered']
    #allocation9 [shape = 'u8[4096]{0}', space=vmem, size = 0x1000, scoped, tag = 'output window, operand 0, single buffered']
    %12 = vsyncpa [#allocation4], 0
    %13 = vsyncpa [#allocation7], 0
    %14 = vsyncpa [#allocation5], 0
    // Predicated region
    $region2: #{tpu_custom_call.1} parent=1 // pred_check
      _
    $region3: #{tpu_custom_call.1} parent=1 // pred_check_branch
      %16 = sbr.rel (0) target = $region5
    $region4: #{tpu_custom_call.1} parent=1 // pred_region
      %s18 = ssub.s32 128, 128
      %19 = vsyncadd [#allocation4], %s18
      %s21 = sshll.u32 [#allocation3], 4
      %s22 = int_to_ptr.vmem [resolvable:$true] %s21
      %24 = dma.hbm_to_vmem [thread:$0]  %s0, 128, %s22, [#allocation4]
    $region5: #{tpu_custom_call.1} parent=1 // pred_fallthru
      _
    // Predicated region
    $region6: #{tpu_custom_call.1} parent=1 // pred_check
      _
    $region7: #{tpu_custom_call.1} parent=1 // pred_check_branch
      %26 = sbr.rel (0) target = $region9
    $region8: #{tpu_custom_call.1} parent=1 // pred_region
      %s28 = ssub.s32 512, 512
      %29 = vsyncadd [#allocation7], %s28
      %s30 = sshll.u32 [#allocation6], 4
      %s31 = int_to_ptr.vmem [resolvable:$true] %s30
      %36 = dma.hbm_to_vmem [thread:$0]  %s1, 512, %s31, [#allocation7], 128, 128, 8
    $region9: #{tpu_custom_call.1} parent=1 // pred_fallthru
      _
    // Predicated region
    $region10: #{tpu_custom_call.1} parent=1 // pred_check
      _
    $region11: #{tpu_custom_call.1} parent=1 // pred_check_branch
      %38 = sbr.rel (0) target = $region13
    $region12: #{tpu_custom_call.1} parent=1 // pred_region
      _
    $region13: #{tpu_custom_call.1} parent=1 // pred_fallthru
      _
    // Predicated region
    $region14: #{tpu_custom_call.1} parent=1 // pred_check
      _
    $region15: #{tpu_custom_call.1} parent=1 // pred_check_branch
      %40 = sbr.rel (0) target = $region17
    $region16: #{tpu_custom_call.1} parent=1 // pred_region
      _
    $region17: #{tpu_custom_call.1} parent=1 // pred_fallthru
      _
    // Predicated region
    $region18: #{tpu_custom_call.1} parent=1 // pred_check
      _
    $region19: #{tpu_custom_call.1} parent=1 // pred_check_branch
      %42 = sbr.rel (0) target = $region21
    $region20: #{tpu_custom_call.1} parent=1 // pred_region
      _
    $region21: #{tpu_custom_call.1} parent=1 // pred_fallthru
      _
    // Predicated region
    $region22: #{tpu_custom_call.1} parent=1 // pred_check
      _
    $region23: #{tpu_custom_call.1} parent=1 // pred_check_branch
      %44 = sbr.rel (0) target = $region25
    $region24: #{tpu_custom_call.1} parent=1 // pred_region
      %s46 = ssub.s32 1024, 1024
      %47 = vsyncadd [#allocation7], %s46
      %s48 = sshll.u32 [#allocation8], 4
      %s49 = int_to_ptr.vmem [resolvable:$true] %s48
      %54 = dma.hbm_to_vmem [thread:$0]  %s5, 1024, %s49, [#allocation7], 128, 128, 8
    $region25: #{tpu_custom_call.1} parent=1 // pred_fallthru
      _
    // Predicated region
    $region26: #{tpu_custom_call.1} parent=1 // pred_check
      _
    $region27: #{tpu_custom_call.1} parent=1 // pred_check_branch
      %56 = sbr.rel (0) target = $region29
    $region28: #{tpu_custom_call.1} parent=1 // pred_region
      _
    $region29: #{tpu_custom_call.1} parent=1 // pred_fallthru
      _
    // Predicated region
    $region30: #{tpu_custom_call.1} parent=1 // pred_check
      _
    $region31: #{tpu_custom_call.1} parent=1 // pred_check_branch
      %58 = sbr.rel (0) target = $region33
    $region32: #{tpu_custom_call.1} parent=1 // pred_region
      %59 = dma.done [#allocation4], 128
    $region33: #{tpu_custom_call.1} parent=1 // pred_fallthru
      _
    // Predicated region
    $region34: #{tpu_custom_call.1} parent=1 // pred_check
      _
    $region35: #{tpu_custom_call.1} parent=1 // pred_check_branch
      %61 = sbr.rel (0) target = $region37
    $region36: #{tpu_custom_call.1} parent=1 // pred_region
      %62 = dma.done [#allocation7], 512
    $region37: #{tpu_custom_call.1} parent=1 // pred_fallthru
      _
    // Predicated region
    $region38: #{tpu_custom_call.1} parent=1 // pred_check
      _
    $region39: #{tpu_custom_call.1} parent=1 // pred_check_branch
      %64 = sbr.rel (0) target = $region41
    $region40: #{tpu_custom_call.1} parent=1 // pred_region
      %65 = dma.done [#allocation7], 1024
    $region41: #{tpu_custom_call.1} parent=1 // pred_fallthru
      _
    %p66 = scmp.eq.s32.totalorder 0, 0
    // Predicated region
    $region42: #{tpu_custom_call.1} parent=1 // pred_check
      %p67 = pneg %p66
    $region43: #{tpu_custom_call.1} parent=1 // pred_check_branch
      %69 = sbr.rel (%p67) target = $region45
    $region44: #{tpu_custom_call.1} parent=1 // pred_region
      %vm70 = vcmask 523264
      %71 = vst.msk [vmem:[#allocation2] sm:$0xff] %vm70, 0.0
    $region45: #{tpu_custom_call.1} parent=1 // pred_fallthru
      _
    %v72 = vld [vmem:[#allocation2] sm:$0xff]
    %v73 = vld [vmem:[#allocation3] sm:$0xff]
    %v74 = vld [vmem:[#allocation6] sm:$0xff]
    %v75 = vld [vmem:[#allocation6 + $0x8] sm:$0xff]
    %v76 = vld [vmem:[#allocation6 + $0x10] sm:$0xff]
    %v77 = vld [vmem:[#allocation6 + $0x18] sm:$0xff]
    %vm78 = vcmask 261120
    %v80 = vsel %vm78, %v73, 0
    %82 = vmatprep.subr.mxu0 0.0
    %83 = vmatpush1.msra.mxu0 %v74
    %84 = vmatprep.subr.mxu0 0.0
    %85 = vmatpush1.msra.mxu0 %v75
    %86 = vmatprep.subr.mxu0 0.0
    %87 = vmatpush1.msra.mxu0 %v76
    %88 = vmatprep.subr.mxu0 0.0
    %89 = vmatpush1.msra.mxu0 %v77
    %90 = vmatprep.subr.mxu0 0.0
    %91 = vmatpush1.msra.mxu0 0.0
    %92 = vmatprep.subr.mxu0 0.0
    %93 = vmatpush1.msra.mxu0 0.0
    %94 = vmatprep.subr.mxu0 0.0
    %95 = vmatpush1.msra.mxu0 0.0
    %96 = vmatprep.subr.mxu0 0.0
    %97 = vmatpush1.msra.mxu0 0.0
    %98 = vmatprep.subr.mxu0 0.0
    %99 = vmatpush1.msra.mxu0 0.0
    %100 = vmatprep.subr.mxu0 0.0
    %101 = vmatpush1.msra.mxu0 0.0
    %102 = vmatprep.subr.mxu0 0.0
    %103 = vmatpush1.msra.mxu0 0.0
    %104 = vmatprep.subr.mxu0 0.0
    %105 = vmatpush1.msra.mxu0 0.0
    %106 = vmatprep.subr.mxu0 0.0
    %107 = vmatpush1.msra.mxu0 0.0
    %108 = vmatprep.subr.mxu0 0.0
    %109 = vmatpush1.msra.mxu0 0.0
    %110 = vmatprep.subr.mxu0 0.0
    %111 = vmatpush1.msra.mxu0 0.0
    %112 = vmatprep.subr.mxu0 0.0
    %113 = vmatpush1.msra.mxu0 0.0
    %114 = vmatprep.subr.mxu0 0.0
    %115 = vmatpush1.msra.mxu0 0.0
    %116 = vmatprep.subr.mxu0 0.0
    %117 = vmatpush1.msra.mxu0 0.0
    %118 = vmatprep.subr.mxu0 0.0
    %119 = vmatpush1.msra.mxu0 0.0
    %120 = vmatprep.subr.mxu0 0.0
    %121 = vmatpush1.msra.mxu0 0.0
    %122 = vmatprep.subr.mxu0 0.0
    %123 = vmatpush1.msra.mxu0 0.0
    %124 = vmatprep.subr.mxu0 0.0
    %125 = vmatpush1.msra.mxu0 0.0
    %126 = vmatprep.subr.mxu0 0.0
    %127 = vmatpush1.msra.mxu0 0.0
    %128 = vmatprep.subr.mxu0 0.0
    %129 = vmatpush1.msra.mxu0 0.0
    %130 = vmatprep.subr.mxu0 0.0
    %131 = vmatpush1.msra.mxu0 0.0
    %132 = vmatprep.subr.mxu0 0.0
    %133 = vmatpush1.msra.mxu0 0.0
    %134 = vmatprep.subr.mxu0 0.0
    %135 = vmatpush1.msra.mxu0 0.0
    %136 = vmatprep.subr.mxu0 0.0
    %137 = vmatpush1.msra.mxu0 0.0
    %138 = vmatprep.subr.mxu0 0.0
    %139 = vmatpush1.msra.mxu0 0.0
    %140 = vmatprep.subr.mxu0 0.0
    %141 = vmatpush1.msra.mxu0 0.0
    %142 = vmatprep.subr.mxu0 0.0
    %143 = vmatpush1.msra.mxu0 0.0
    %144 = vmatprep.subr.mxu0 0.0
    %145 = vmatpush1.msra.mxu0 0.0
    %146 = vmatprep.mubr.f32.mxu0 0.0
    %147 = vmatmul.mubr.f32.gmra.mrb[0].mxu0 %v80
    %v148 = vpop.f32.mrb[0].mxu0
    %v149 = vadd.f32 0.0, %v148
    %v150 = vpop.f32.mrb[0].mxu0
    %151 = vdwg.mxu0
    %v152 = vadd.f32 %v72, %v149
    %vm153 = vcmask 523264
    %154 = vst.msk [vmem:[#allocation2] sm:$0xff] %vm153, %v152
    // Predicated region
    $region46: #{tpu_custom_call.1} parent=1 // pred_check
      %p155 = pneg %p66
    $region47: #{tpu_custom_call.1} parent=1 // pred_check_branch
      %157 = sbr.rel (%p155) target = $region49
    $region48: #{tpu_custom_call.1} parent=1 // pred_region
      %v158 = vld [vmem:[%s2] sm:$0x1]
      %v159 = vld [vmem:[%s3] sm:$0x1]
      %v160 = vld [vmem:[%s4] sm:$0x1]
      %v161 = vld [vmem:[%s6] sm:$0x1]
      %v162 = vld [vmem:[#allocation2] sm:$0xff]
      %v164 = vlaneseq
      %v165 = vshrl.u32 %v164, 7
      %v166 = vsub.s32 0, %v165
      %v167 = vrot.slane %v158, %v166
      %v169 = vadd.f32 %v162, %v167
      %v170 = vmul.f32 %v169, 0.5
      %v171 = vmul.f32 %v169, 0.70710677
      %v172 = verf.f32.pop %v171
      %v173 = vadd.f32 %v172, 1.0
      %v174 = vmul.f32 %v170, %v173
      %v175 = vsel %vm153, %v174, 0.0
      %176 = vadd.xlane.f32.xlu0 %v175
      %v177 = vpop.xlane.xlu0 %176
      %v178 = vrcp.pop 64.0
      %v179 = vmul.f32 %v177, %v178
      %v180 = vsub.f32 %v174, %v179
      %v181 = vmul.f32 %v180, %v180
      %v182 = vsel %vm153, %v181, 0.0
      %183 = vadd.xlane.f32.xlu0 %v182
      %v184 = vpop.xlane.xlu0 %183
      %v185 = vmul.f32 %v184, %v178
      %v186 = vadd.f32 %v185, 1e-05
      %v187 = vrsqrt.pop %v186
      %v188 = vmul.f32 %v180, %v187
      %v190 = vlaneseq
      %v191 = vshrl.u32 %v190, 7
      %v192 = vsub.s32 0, %v191
      %v193 = vrot.slane %v159, %v192
      %v195 = vmul.f32 %v188, %v193
      %v197 = vlaneseq
      %v198 = vshrl.u32 %v197, 7
      %v199 = vsub.s32 0, %v198
      %v200 = vrot.slane %v160, %v199
      %v202 = vadd.f32 %v195, %v200
      %v203 = vld [vmem:[#allocation8] sm:$0xff]
      %v204 = vld [vmem:[#allocation8 + $0x8] sm:$0xff]
      %v205 = vld [vmem:[#allocation8 + $0x10] sm:$0xff]
      %v206 = vld [vmem:[#allocation8 + $0x18] sm:$0xff]
      %v207 = vld [vmem:[#allocation8 + $0x20] sm:$0xff]
      %v208 = vld [vmem:[#allocation8 + $0x28] sm:$0xff]
      %v209 = vld [vmem:[#allocation8 + $0x30] sm:$0xff]
      %v210 = vld [vmem:[#allocation8 + $0x38] sm:$0xff]
      %v212 = vlaneseq
      %v213 = vshrl.u32 %v212, 7
      %v214 = vsub.s32 0, %v213
      %v215 = vrot.slane %v161, %v214
      %v218 = vsel %vm153, %v202, 0
      %220 = vmatprep.subr.mxu0 0.0
      %221 = vmatpush1.msra.mxu0 %v203
      %222 = vmatprep.subr.mxu0 0.0
      %223 = vmatpush1.msra.mxu0 %v204
      %224 = vmatprep.subr.mxu0 0.0
      %225 = vmatpush1.msra.mxu0 %v205
      %226 = vmatprep.subr.mxu0 0.0
      %227 = vmatpush1.msra.mxu0 %v206
      %228 = vmatprep.subr.mxu0 0.0
      %229 = vmatpush1.msra.mxu0 %v207
      %230 = vmatprep.subr.mxu0 0.0
      %231 = vmatpush1.msra.mxu0 %v208
      %232 = vmatprep.subr.mxu0 0.0
      %233 = vmatpush1.msra.mxu0 %v209
      %234 = vmatprep.subr.mxu0 0.0
      %235 = vmatpush1.msra.mxu0 %v210
      %236 = vmatprep.subr.mxu0 0.0
      %237 = vmatpush1.msra.mxu0 0.0
      %238 = vmatprep.subr.mxu0 0.0
      %239 = vmatpush1.msra.mxu0 0.0
      %240 = vmatprep.subr.mxu0 0.0
      %241 = vmatpush1.msra.mxu0 0.0
      %242 = vmatprep.subr.mxu0 0.0
      %243 = vmatpush1.msra.mxu0 0.0
      %244 = vmatprep.subr.mxu0 0.0
      %245 = vmatpush1.msra.mxu0 0.0
      %246 = vmatprep.subr.mxu0 0.0
      %247 = vmatpush1.msra.mxu0 0.0
      %248 = vmatprep.subr.mxu0 0.0
      %249 = vmatpush1.msra.mxu0 0.0
      %250 = vmatprep.subr.mxu0 0.0
      %251 = vmatpush1.msra.mxu0 0.0
      %252 = vmatprep.subr.mxu0 0.0
      %253 = vmatpush1.msra.mxu0 0.0
      %254 = vmatprep.subr.mxu0 0.0
      %255 = vmatpush1.msra.mxu0 0.0
      %256 = vmatprep.subr.mxu0 0.0
      %257 = vmatpush1.msra.mxu0 0.0
      %258 = vmatprep.subr.mxu0 0.0
      %259 = vmatpush1.msra.mxu0 0.0
      %260 = vmatprep.subr.mxu0 0.0
      %261 = vmatpush1.msra.mxu0 0.0
      %262 = vmatprep.subr.mxu0 0.0
      %263 = vmatpush1.msra.mxu0 0.0
      %264 = vmatprep.subr.mxu0 0.0
      %265 = vmatpush1.msra.mxu0 0.0
      %266 = vmatprep.subr.mxu0 0.0
      %267 = vmatpush1.msra.mxu0 0.0
      %268 = vmatprep.subr.mxu0 0.0
      %269 = vmatpush1.msra.mxu0 0.0
      %270 = vmatprep.subr.mxu0 0.0
      %271 = vmatpush1.msra.mxu0 0.0
      %272 = vmatprep.subr.mxu0 0.0
      %273 = vmatpush1.msra.mxu0 0.0
      %274 = vmatprep.subr.mxu0 0.0
      %275 = vmatpush1.msra.mxu0 0.0
      %276 = vmatprep.subr.mxu0 0.0
      %277 = vmatpush1.msra.mxu0 0.0
      %278 = vmatprep.subr.mxu0 0.0
      %279 = vmatpush1.msra.mxu0 0.0
      %280 = vmatprep.subr.mxu0 0.0
      %281 = vmatpush1.msra.mxu0 0.0
      %282 = vmatprep.subr.mxu0 0.0
      %283 = vmatpush1.msra.mxu0 0.0
      %284 = vmatprep.mubr.f32.mxu0 0.0
      %285 = vmatmul.mubr.f32.gmra.mrb[0].mxu0 %v218
      %v286 = vpop.f32.mrb[0].mxu0
      %v287 = vadd.f32 %v215, %v286
      %v288 = vpop.f32.mrb[0].mxu0
      %289 = vdwg.mxu0
      %290 = vst [vmem:[#allocation9] sm:$0xff] %v287
    $region49: #{tpu_custom_call.1} parent=1 // pred_fallthru
      _
    // Predicated region
    $region50: #{tpu_custom_call.1} parent=1 // pred_check
      _
    $region51: #{tpu_custom_call.1} parent=1 // pred_check_branch
      %292 = sbr.rel (0) target = $region53
    $region52: #{tpu_custom_call.1} parent=1 // pred_region
      %s294 = ssub.s32 128, 128
      %295 = vsyncadd [#allocation5], %s294
      %s297 = sshll.u32 [#allocation9], 4
      %s298 = int_to_ptr.vmem [resolvable:$true] %s297
      %300 = dma.vmem_to_hbm [thread:$0]  %s298, 128, %s7, [#allocation5]
    $region53: #{tpu_custom_call.1} parent=1 // pred_fallthru
      _
    // Predicated region
    $region54: #{tpu_custom_call.1} parent=1 // pred_check
      _
    $region55: #{tpu_custom_call.1} parent=1 // pred_check_branch
      %302 = sbr.rel (0) target = $region57
    $region56: #{tpu_custom_call.1} parent=1 // pred_region
      %303 = dma.done [#allocation5], 128
    $region57: #{tpu_custom_call.1} parent=1 // pred_fallthru
      _
    %304 = vsyncpa [#allocation4], 1
    %305 = vsyncpa [#allocation7], 1
    %306 = vsyncpa [#allocation5], 1

</llo_original>
